<compile_context>
chip_gen: v7x
topology: tpu7x:2x2x1
jax: 0.10.0
libtpu: 0.0.40
codegen_flags: <defaults>
</compile_context>

<pallas_src>
import functools

import jax
import jax.numpy as jnp
from jax.experimental import pallas as pl
from jax.experimental.pallas import tpu as pltpu


def _round_up(x: int, m: int) -> int:
    return ((x + m - 1) // m) * m


def _cdiv(a: int, b: int) -> int:
    return (a + b - 1) // b


def _forward_kernel(z_ref, w1_ref, ln_ref, wmu_ref, bmu_ref, mu_ref, *,
                    real_hidden: int, eps: float):
    """One batch-tile of the forward pass.

    z_ref   : (bm, z_dim)
    w1_ref  : (z_dim, hid_p)   zero-padded beyond `real_hidden`
    ln_ref  : (3, hid_p)       rows = [fc1 bias; LN gamma; LN beta], zero-padded
    wmu_ref : (hid_p, z_dim)   zero-padded rows
    bmu_ref : (1, z_dim)
    mu_ref  : (bm, z_dim)
    """
    # fc1 on the MXU.  Cast the LHS to the weight dtype so bf16 weights hit
    # the native bf16 MXU path (v5e has no fast f32 matmul); f32 accumulation.
    h = jnp.dot(z_ref[...].astype(w1_ref.dtype), w1_ref[...],
                preferred_element_type=jnp.float32)

    ln = ln_ref[...].astype(jnp.float32)          # (3, hid_p)
    h = h + ln[0:1, :]                            # + fc1 bias (pad lanes stay 0)

    # LayerNorm over the REAL hidden features (f32 math — safe on v5e, whose
    # VPU/EUP have no bf16).  Pad lanes of h are exactly 0, so the mean sum is
    # exact; the centered pass is masked so pad lanes don't pollute variance.
    inv_h = 1.0 / float(real_hidden)
    mean = jnp.sum(h, axis=-1, keepdims=True) * inv_h
    lane = jax.lax.broadcasted_iota(jnp.int32, h.shape, dimension=1)
    d = jnp.where(lane < real_hidden, h - mean, 0.0)
    var = jnp.sum(d * d, axis=-1, keepdims=True) * inv_h
    rstd = jax.lax.rsqrt(var + eps)                       # EUP
    scale = rstd * ln[1:2, :]                             # gamma folded; pad -> 0
    shift = ln[2:3, :] - mean * scale                     # beta folded;  pad -> 0
    h = jnp.maximum(h * scale + shift, 0.0)               # LN affine + ReLU

    # fc_mu on the MXU; match the weight dtype so bf16 weights stay bf16.
    # Output last dim is the real z_dim (no lane padding on the writeback).
    mu = jnp.dot(h.astype(wmu_ref.dtype), wmu_ref[...],
                 preferred_element_type=jnp.float32)
    mu_ref[...] = (mu + bmu_ref[...].astype(jnp.float32)).astype(mu_ref.dtype)


@functools.partial(jax.jit, static_argnames=("block_b",))
def marginal_forward(z, w1, b1, gamma, beta, w_mu, b_mu, *, block_b=2048):
    """Pallas implementation of MarginalDeterministicForwardModel.forward.

    Weights are stored pre-transposed: w1 (z_dim, hidden), w_mu (hidden, z_dim).
    Returns (mu, sigma) with sigma=None, matching the PyTorch module.
    """
    B, z_dim = z.shape
    hidden = w1.shape[1]

    # MXU operand dtype is the weight dtype (LHS cast in-kernel).  16-bit
    # operands pack 2 rows per sublane, so round batch tiles to 16 then; 8 else.
    op_bytes = min(jnp.dtype(z.dtype).itemsize, jnp.dtype(w1.dtype).itemsize)
    row_mult = 16 if op_bytes < 4 else 8

    # ---- lane-dense hidden padding (done on tiny parameter tensors) ----
    hid_p = _round_up(hidden, 128)
    w1_p = jnp.pad(w1, ((0, 0), (0, hid_p - hidden)))
    # [b1; gamma; beta] stacked; gamma padded with ZEROS (not ones) so padded
    # lanes are exactly 0 after the LN affine.
    ln_params = jnp.concatenate(
        [b1.reshape(1, -1), gamma.reshape(1, -1), beta.reshape(1, -1)], axis=0)
    ln_params = jnp.pad(ln_params, ((0, 0), (0, hid_p - hidden)))
    w_mu_p = jnp.pad(w_mu, ((0, hid_p - hidden), (0, 0)))
    b_mu_2d = b_mu.reshape(1, -1)

    # ---- batch tiling: tile derived from tile count (minimal padding),
    #      >= 2 grid steps for non-trivial B so v7x uses both TensorCores ----
    num_tiles = max(1, _cdiv(B, block_b))
    if num_tiles == 1 and B >= 256:
        num_tiles = 2
    bm = _round_up(_cdiv(B, num_tiles), row_mult)
    num_tiles = _cdiv(B, bm)
    B_p = num_tiles * bm
    z_p = jnp.pad(z, ((0, B_p - B), (0, 0))) if B_p != B else z

    kernel = functools.partial(_forward_kernel, real_hidden=hidden, eps=1e-5)

    mu_p = pl.pallas_call(
        kernel,
        out_shape=jax.ShapeDtypeStruct((B_p, z_dim), z.dtype),
        grid_spec=pltpu.PrefetchScalarGridSpec(
            num_scalar_prefetch=0,
            grid=(num_tiles,),
            in_specs=[
                pl.BlockSpec((bm, z_dim), lambda i: (i, 0)),     # z tile
                pl.BlockSpec((z_dim, hid_p), lambda i: (0, 0)),  # W1 (padded)
                pl.BlockSpec((3, hid_p), lambda i: (0, 0)),      # [b1;gamma;beta]
                pl.BlockSpec((hid_p, z_dim), lambda i: (0, 0)),  # W_mu (rows padded)
                pl.BlockSpec((1, z_dim), lambda i: (0, 0)),      # b_mu
            ],
            out_specs=pl.BlockSpec((bm, z_dim), lambda i: (i, 0)),
        ),
        compiler_params=pltpu.CompilerParams(
            dimension_semantics=("parallel",),
            vmem_limit_bytes=32 * 1024 * 1024),
    )(z_p, w1_p, ln_params, w_mu_p, b_mu_2d)

    mu = mu_p if B_p == B else mu_p[:B]   # batch-only slice; no feature-dim slice
    sigma = None
    return mu, sigma


def _init_params(key, z_dim, hidden_dim, dtype=jnp.float32):
    """Deterministic parameter init mimicking nn.Linear / nn.LayerNorm defaults."""
    k1, k2, k3, k4 = jax.random.split(key, 4)
    bound1 = 1.0 / jnp.sqrt(z_dim)
    bound2 = 1.0 / jnp.sqrt(hidden_dim)
    # stored as (in, out) == PyTorch weight.T
    w1 = jax.random.uniform(k1, (z_dim, hidden_dim), jnp.float32, -bound1, bound1)
    b1 = jax.random.uniform(k2, (1, hidden_dim), jnp.float32, -bound1, bound1)
    gamma = jnp.ones((1, hidden_dim), jnp.float32)    # nn.LayerNorm weight
    beta = jnp.zeros((1, hidden_dim), jnp.float32)    # nn.LayerNorm bias
    w_mu = jax.random.uniform(k3, (hidden_dim, z_dim), jnp.float32, -bound2, bound2)
    b_mu = jax.random.uniform(k4, (1, z_dim), jnp.float32, -bound2, bound2)
    return tuple(p.astype(dtype) for p in (w1, b1, gamma, beta, w_mu, b_mu))


def _reference(z, w1, b1, gamma, beta, w_mu, b_mu):
    """Pure-JAX f32 reference of the same forward pass (correctness check)."""
    f32 = lambda a: a.astype(jnp.float32)
    h = f32(z) @ f32(w1) + f32(b1)
    mean = jnp.mean(h, axis=-1, keepdims=True)
    var = jnp.mean((h - mean) ** 2, axis=-1, keepdims=True)
    h = (h - mean) / jnp.sqrt(var + 1e-5) * f32(gamma) + f32(beta)
    h = jnp.maximum(h, 0.0)
    return h @ f32(w_mu) + f32(b_mu)


if __name__ == "__main__":
    # Small shapes consistent with the module: z_dim=32, hidden_dim=64, batch=8
    B, Z_DIM, HIDDEN = 8, 32, 64

    key = jax.random.PRNGKey(0)
    k_z, k_p = jax.random.split(key)
    z = jax.random.normal(k_z, (B, Z_DIM), dtype=jnp.float32)
    params = _init_params(k_p, Z_DIM, HIDDEN)

    # ---- f32 path (strict check against the pure-JAX reference) ----
    mu, sigma = marginal_forward(z, *params)
    mu = jax.block_until_ready(mu)
    assert sigma is None
    assert mu.shape == (B, Z_DIM)
    mu_ref = _reference(z, *params)
    assert jnp.allclose(mu, mu_ref, atol=1e-4, rtol=1e-4), (
        float(jnp.max(jnp.abs(mu - mu_ref))))

    # ---- bf16 path (native bf16 MXU operands; loose-tolerance smoke test) ----
    z_bf = z.astype(jnp.bfloat16)
    params_bf = tuple(p.astype(jnp.bfloat16) for p in params)
    mu_bf, _ = marginal_forward(z_bf, *params_bf)
    mu_bf = jax.block_until_ready(mu_bf)
    assert mu_bf.shape == (B, Z_DIM) and mu_bf.dtype == jnp.bfloat16
    mu_ref_bf = _reference(z_bf, *params_bf)   # f32 math on the quantized params
    diff = float(jnp.max(jnp.abs(mu_bf.astype(jnp.float32) - mu_ref_bf)))
    assert jnp.isfinite(mu_bf.astype(jnp.float32)).all() and diff < 1e-1, diff

    print("KERNEL_OK")
</pallas_src>

<mosaic_0001>
module attributes {stable_mosaic.version = 11 : i64} {
  func.func @_forward_kernel(%arg0: i32, %arg1: memref<8x32xf32, #tpu.memory_space<vmem>>, %arg2: memref<32x128xf32, #tpu.memory_space<vmem>>, %arg3: memref<3x128xf32, #tpu.memory_space<vmem>>, %arg4: memref<128x32xf32, #tpu.memory_space<vmem>>, %arg5: memref<1x32xf32, #tpu.memory_space<vmem>>, %arg6: memref<8x32xf32, #tpu.memory_space<vmem>>) attributes {dimension_semantics = [#tpu.dimension_semantics<parallel>], iteration_bounds = array<i64: 1>, scalar_prefetch = 0 : i64, scratch_operands = 0 : i64, tpu.core_type = #tpu.core_type<tc>, window_params = [{transform_indices = @transform_0, window_bounds = array<i64: 8, 32>}, {pipeline_mode = #tpu.pipeline_mode<synchronous>, transform_indices = @transform_1, window_bounds = array<i64: 32, 128>}, {pipeline_mode = #tpu.pipeline_mode<synchronous>, transform_indices = @transform_2, window_bounds = array<i64: 3, 128>}, {pipeline_mode = #tpu.pipeline_mode<synchronous>, transform_indices = @transform_3, window_bounds = array<i64: 128, 32>}, {pipeline_mode = #tpu.pipeline_mode<synchronous>, transform_indices = @transform_4, window_bounds = array<i64: 1, 32>}, {transform_indices = @transform_5, window_bounds = array<i64: 8, 32>}]} {
    %c0 = arith.constant 0 : index
    %c0_0 = arith.constant 0 : index
    %0 = vector.load %arg1[%c0, %c0_0] : memref<8x32xf32, #tpu.memory_space<vmem>>, vector<8x32xf32>
    %c0_1 = arith.constant 0 : index
    %c0_2 = arith.constant 0 : index
    %1 = vector.load %arg2[%c0_1, %c0_2] : memref<32x128xf32, #tpu.memory_space<vmem>>, vector<32x128xf32>
    %cst = arith.constant dense<0.000000e+00> : vector<8x128xf32>
    %2 = tpu.matmul %0, %1, %cst {dimension_numbers = #tpu.dot_dimension_numbers<[1], [0], [0], [1], [0, 0, 1, 1], [], []>} : vector<8x32xf32>, vector<32x128xf32>, vector<8x128xf32> -> vector<8x128xf32>
    %c0_3 = arith.constant 0 : index
    %c0_4 = arith.constant 0 : index
    %3 = vector.load %arg3[%c0_3, %c0_4] : memref<3x128xf32, #tpu.memory_space<vmem>>, vector<3x128xf32>
    %4 = vector.extract_strided_slice %3 {offsets = [0, 0], sizes = [1, 128], strides = [1, 1]} : vector<3x128xf32> to vector<1x128xf32>
    %5 = vector.broadcast %4 : vector<1x128xf32> to vector<8x128xf32>
    %6 = arith.addf %2, %5 : vector<8x128xf32>
    %cst_5 = arith.constant dense<0.000000e+00> : vector<8xf32>
    %7 = vector.multi_reduction <add>, %6, %cst_5 [1] : vector<8x128xf32> to vector<8xf32>
    %8 = vector.shape_cast %7 : vector<8xf32> to vector<8x1xf32>
    %cst_6 = arith.constant 1.562500e-02 : f32
    %9 = vector.broadcast %cst_6 : f32 to vector<8x1xf32>
    %10 = arith.mulf %8, %9 : vector<8x1xf32>
    %11 = tpu.iota {dimensions = array<i32: 1>} : vector<8x128xi32>
    %c64_i32 = arith.constant 64 : i32
    %12 = vector.broadcast %c64_i32 : i32 to vector<8x128xi32>
    %13 = arith.cmpi slt, %11, %12 : vector<8x128xi32>
    %14 = vector.broadcast %10 : vector<8x1xf32> to vector<8x128xf32>
    %15 = arith.subf %6, %14 : vector<8x128xf32>
    %cst_7 = arith.constant 0.000000e+00 : f32
    %16 = vector.broadcast %cst_7 : f32 to vector<8x128xf32>
    %17 = arith.select %13, %15, %16 : vector<8x128xi1>, vector<8x128xf32>
    %18 = arith.mulf %17, %17 : vector<8x128xf32>
    %cst_8 = arith.constant dense<0.000000e+00> : vector<8xf32>
    %19 = vector.multi_reduction <add>, %18, %cst_8 [1] : vector<8x128xf32> to vector<8xf32>
    %20 = vector.shape_cast %19 : vector<8xf32> to vector<8x1xf32>
    %cst_9 = arith.constant 1.562500e-02 : f32
    %21 = vector.broadcast %cst_9 : f32 to vector<8x1xf32>
    %22 = arith.mulf %20, %21 : vector<8x1xf32>
    %cst_10 = arith.constant 9.99999974E-6 : f32
    %23 = vector.broadcast %cst_10 : f32 to vector<8x1xf32>
    %24 = arith.addf %22, %23 : vector<8x1xf32>
    %25 = math.rsqrt %24 : vector<8x1xf32>
    %26 = vector.extract_strided_slice %3 {offsets = [1, 0], sizes = [1, 128], strides = [1, 1]} : vector<3x128xf32> to vector<1x128xf32>
    %27 = vector.broadcast %25 : vector<8x1xf32> to vector<8x128xf32>
    %28 = vector.broadcast %26 : vector<1x128xf32> to vector<8x128xf32>
    %29 = arith.mulf %27, %28 : vector<8x128xf32>
    %30 = vector.extract_strided_slice %3 {offsets = [2, 0], sizes = [1, 128], strides = [1, 1]} : vector<3x128xf32> to vector<1x128xf32>
    %31 = vector.broadcast %10 : vector<8x1xf32> to vector<8x128xf32>
    %32 = arith.mulf %31, %29 : vector<8x128xf32>
    %33 = vector.broadcast %30 : vector<1x128xf32> to vector<8x128xf32>
    %34 = arith.subf %33, %32 : vector<8x128xf32>
    %35 = arith.mulf %6, %29 : vector<8x128xf32>
    %36 = arith.addf %35, %34 : vector<8x128xf32>
    %cst_11 = arith.constant 0.000000e+00 : f32
    %37 = vector.broadcast %cst_11 : f32 to vector<8x128xf32>
    %38 = arith.maximumf %36, %37 : vector<8x128xf32>
    %c0_12 = arith.constant 0 : index
    %c0_13 = arith.constant 0 : index
    %39 = vector.load %arg4[%c0_12, %c0_13] : memref<128x32xf32, #tpu.memory_space<vmem>>, vector<128x32xf32>
    %cst_14 = arith.constant dense<0.000000e+00> : vector<8x32xf32>
    %40 = tpu.matmul %38, %39, %cst_14 {dimension_numbers = #tpu.dot_dimension_numbers<[1], [0], [0], [1], [0, 0, 1, 1], [], []>} : vector<8x128xf32>, vector<128x32xf32>, vector<8x32xf32> -> vector<8x32xf32>
    %c0_15 = arith.constant 0 : index
    %c0_16 = arith.constant 0 : index
    %41 = vector.load %arg5[%c0_15, %c0_16] : memref<1x32xf32, #tpu.memory_space<vmem>>, vector<1x32xf32>
    %42 = vector.broadcast %41 : vector<1x32xf32> to vector<8x32xf32>
    %43 = arith.addf %40, %42 : vector<8x32xf32>
    %c0_17 = arith.constant 0 : index
    %c0_18 = arith.constant 0 : index
    %44 = vector.load %arg6[%c0_17, %c0_18] : memref<8x32xf32, #tpu.memory_space<vmem>>, vector<8x32xf32>
    tpu.vector_store %arg6[%c0_17, %c0_18], %43 {strides = array<i32>} : memref<8x32xf32, #tpu.memory_space<vmem>>, vector<8x32xf32>,
    return
  }
  func.func @transform_0(%arg0: i32) -> (i32, i32) {
    %c0_i32 = arith.constant 0 : i32
    %c0_i32_0 = arith.constant 0 : i32
    return %arg0, %c0_i32 : i32, i32
  }
  func.func @transform_1(%arg0: i32) -> (i32, i32) {
    %c0_i32 = arith.constant 0 : i32
    %c0_i32_0 = arith.constant 0 : i32
    %c0_i32_1 = arith.constant 0 : i32
    return %c0_i32, %c0_i32_0 : i32, i32
  }
  func.func @transform_2(%arg0: i32) -> (i32, i32) {
    %c0_i32 = arith.constant 0 : i32
    %c0_i32_0 = arith.constant 0 : i32
    %c0_i32_1 = arith.constant 0 : i32
    return %c0_i32, %c0_i32_0 : i32, i32
  }
  func.func @transform_3(%arg0: i32) -> (i32, i32) {
    %c0_i32 = arith.constant 0 : i32
    %c0_i32_0 = arith.constant 0 : i32
    %c0_i32_1 = arith.constant 0 : i32
    return %c0_i32, %c0_i32_0 : i32, i32
  }
  func.func @transform_4(%arg0: i32) -> (i32, i32) {
    %c0_i32 = arith.constant 0 : i32
    %c0_i32_0 = arith.constant 0 : i32
    %c0_i32_1 = arith.constant 0 : i32
    return %c0_i32, %c0_i32_0 : i32, i32
  }
  func.func @transform_5(%arg0: i32) -> (i32, i32) {
    %c0_i32 = arith.constant 0 : i32
    %c0_i32_0 = arith.constant 0 : i32
    return %arg0, %c0_i32 : i32, i32
  }
}

</mosaic_0001>

<llo_original>
// kernel: marginal_forward.1
$region0: #{marginal_forward.1}
  #allocation0 [shape = 'u32[]', space=smem, size = 0x4, offset = 0x4, fixed_abs, tag = 'smem constant byte address 0x4 - core index']
  #allocation1 [shape = 'u32[144,128]{1,0:T(1,128)}', space=vmem, size = 0x12000, scoped, tag = 'internal scratch']
  %s0 = inlined_call_operand.vmem [shape: f32[8,32], index: 0, kind: input, shape index: {}]
  %s1 = inlined_call_operand.vmem [shape: f32[32,128], index: 1, kind: input, shape index: {}]
  %s2 = inlined_call_operand.vmem [shape: f32[3,128], index: 2, kind: input, shape index: {}]
  %s3 = inlined_call_operand.vmem [shape: f32[128,32], index: 3, kind: input, shape index: {}]
  %s4 = inlined_call_operand.vmem [shape: f32[1,32], index: 4, kind: input, shape index: {}]
  %s5 = inlined_call_operand.hbm [shape: f32[8,32], index: 5, kind: output, shape index: {}]
  %s6 = sld [smem:[#allocation0]]
  $region30: #{marginal_forward.1} parent=0
    _
  %s8 = ssub.s32 1, %s6
  %s9 = scalar_select 0, %s8, %s6
  $region1: #{marginal_forward.1} parent=0
    #allocation2 [shape = 'u8[4096]{0}', space=vmem, size = 0x1000, scoped, tag = 'output window, operand 0, single buffered']
    #allocation3 [shape = 's32[1]{0}', space=sflag, size = 0x4, scoped, tag = 'scoped memory for marginal_forward.1']
    %10 = vsyncpa [#allocation3], 0
    // Predicated region
    $region2: #{marginal_forward.1} parent=1 // pred_check
      _
    $region3: #{marginal_forward.1} parent=1 // pred_check_branch
      %12 = sbr.rel (0) target = $region5
    $region4: #{marginal_forward.1} parent=1 // pred_region
      _
    $region5: #{marginal_forward.1} parent=1 // pred_fallthru
      _
    // Predicated region
    $region6: #{marginal_forward.1} parent=1 // pred_check
      _
    $region7: #{marginal_forward.1} parent=1 // pred_check_branch
      %14 = sbr.rel (0) target = $region9
    $region8: #{marginal_forward.1} parent=1 // pred_region
      _
    $region9: #{marginal_forward.1} parent=1 // pred_fallthru
      _
    // Predicated region
    $region10: #{marginal_forward.1} parent=1 // pred_check
      _
    $region11: #{marginal_forward.1} parent=1 // pred_check_branch
      %16 = sbr.rel (0) target = $region13
    $region12: #{marginal_forward.1} parent=1 // pred_region
      _
    $region13: #{marginal_forward.1} parent=1 // pred_fallthru
      _
    // Predicated region
    $region14: #{marginal_forward.1} parent=1 // pred_check
      _
    $region15: #{marginal_forward.1} parent=1 // pred_check_branch
      %18 = sbr.rel (0) target = $region17
    $region16: #{marginal_forward.1} parent=1 // pred_region
      _
    $region17: #{marginal_forward.1} parent=1 // pred_fallthru
      _
    // Predicated region
    $region18: #{marginal_forward.1} parent=1 // pred_check
      _
    $region19: #{marginal_forward.1} parent=1 // pred_check_branch
      %20 = sbr.rel (0) target = $region21
    $region20: #{marginal_forward.1} parent=1 // pred_region
      _
    $region21: #{marginal_forward.1} parent=1 // pred_fallthru
      _
    %v21 = vld [vmem:[%s0] sm:$0xff]
    %v22 = vld [vmem:[%s1] sm:$0xff]
    %v23 = vld [vmem:[%s1 + $0x8] sm:$0xff]
    %v24 = vld [vmem:[%s1 + $0x10] sm:$0xff]
    %v25 = vld [vmem:[%s1 + $0x18] sm:$0xff]
    %v26 = vld [vmem:[%s2] sm:$0x7]
    %v27 = vlaneseq
    %v28 = vshrl.u32 %v27, 7
    %v29 = vsub.s32 0, %v28
    %v30 = vrot.slane %v26, %v29
    %vm31 = vcmask 261120
    %v33 = vsel %vm31, %v21, 0
    %35 = vmatprep.subr.mxu0 0.0
    %36 = vmatpush1.msra.mxu0 %v22
    %37 = vmatprep.subr.mxu0 0.0
    %38 = vmatpush1.msra.mxu0 %v23
    %39 = vmatprep.subr.mxu0 0.0
    %40 = vmatpush1.msra.mxu0 %v24
    %41 = vmatprep.subr.mxu0 0.0
    %42 = vmatpush1.msra.mxu0 %v25
    %43 = vmatprep.subr.mxu0 0.0
    %44 = vmatpush1.msra.mxu0 0.0
    %45 = vmatprep.subr.mxu0 0.0
    %46 = vmatpush1.msra.mxu0 0.0
    %47 = vmatprep.subr.mxu0 0.0
    %48 = vmatpush1.msra.mxu0 0.0
    %49 = vmatprep.subr.mxu0 0.0
    %50 = vmatpush1.msra.mxu0 0.0
    %51 = vmatprep.subr.mxu0 0.0
    %52 = vmatpush1.msra.mxu0 0.0
    %53 = vmatprep.subr.mxu0 0.0
    %54 = vmatpush1.msra.mxu0 0.0
    %55 = vmatprep.subr.mxu0 0.0
    %56 = vmatpush1.msra.mxu0 0.0
    %57 = vmatprep.subr.mxu0 0.0
    %58 = vmatpush1.msra.mxu0 0.0
    %59 = vmatprep.subr.mxu0 0.0
    %60 = vmatpush1.msra.mxu0 0.0
    %61 = vmatprep.subr.mxu0 0.0
    %62 = vmatpush1.msra.mxu0 0.0
    %63 = vmatprep.subr.mxu0 0.0
    %64 = vmatpush1.msra.mxu0 0.0
    %65 = vmatprep.subr.mxu0 0.0
    %66 = vmatpush1.msra.mxu0 0.0
    %67 = vmatprep.subr.mxu0 0.0
    %68 = vmatpush1.msra.mxu0 0.0
    %69 = vmatprep.subr.mxu0 0.0
    %70 = vmatpush1.msra.mxu0 0.0
    %71 = vmatprep.subr.mxu0 0.0
    %72 = vmatpush1.msra.mxu0 0.0
    %73 = vmatprep.subr.mxu0 0.0
    %74 = vmatpush1.msra.mxu0 0.0
    %75 = vmatprep.subr.mxu0 0.0
    %76 = vmatpush1.msra.mxu0 0.0
    %77 = vmatprep.subr.mxu0 0.0
    %78 = vmatpush1.msra.mxu0 0.0
    %79 = vmatprep.subr.mxu0 0.0
    %80 = vmatpush1.msra.mxu0 0.0
    %81 = vmatprep.subr.mxu0 0.0
    %82 = vmatpush1.msra.mxu0 0.0
    %83 = vmatprep.subr.mxu0 0.0
    %84 = vmatpush1.msra.mxu0 0.0
    %85 = vmatprep.subr.mxu0 0.0
    %86 = vmatpush1.msra.mxu0 0.0
    %87 = vmatprep.subr.mxu0 0.0
    %88 = vmatpush1.msra.mxu0 0.0
    %89 = vmatprep.subr.mxu0 0.0
    %90 = vmatpush1.msra.mxu0 0.0
    %91 = vmatprep.subr.mxu0 0.0
    %92 = vmatpush1.msra.mxu0 0.0
    %93 = vmatprep.subr.mxu0 0.0
    %94 = vmatpush1.msra.mxu0 0.0
    %95 = vmatprep.subr.mxu0 0.0
    %96 = vmatpush1.msra.mxu0 0.0
    %97 = vmatprep.subr.mxu0 0.0
    %98 = vmatpush1.msra.mxu0 0.0
    %99 = vmatprep.mubr.f32.mxu0 0.0
    %100 = vmatmul.mubr.f32.gmra.mrb[0].mxu0 %v33
    %v101 = vpop.f32.mrb[0].mxu0
    %v102 = vadd.f32 %v30, %v101
    %v103 = vpop.f32.mrb[0].mxu0
    %104 = vdwg.mxu0
    %105 = vadd.xlane.f32.xlu0 %v102
    %v106 = vpop.xlane.xlu0 %105
    %v107 = vmul.f32 %v106, 0.015625
    %v108 = vlaneseq
    %v109 = vand.u32 %v108, 127
    %vm110 = vcmp.lt.s32.totalorder %v109, 64
    %v111 = vsub.f32 %v102, %v107
    %v112 = vsel %vm110, %v111, 0.0
    %v113 = vmul.f32 %v112, %v112
    %114 = vadd.xlane.f32.xlu0 %v113
    %v115 = vpop.xlane.xlu0 %114
    %v116 = vmul.f32 %v115, 0.015625
    %v117 = vadd.f32 %v116, 1e-05
    %v118 = vrsqrt.pop %v117
    %v119 = vlaneseq
    %v120 = vshrl.u32 %v119, 7
    %v121 = vsub.s32 1, %v120
    %v122 = vrot.slane %v26, %v121
    %v123 = vmul.f32 %v118, %v122
    %v124 = vmul.f32 %v107, %v123
    %v125 = vlaneseq
    %v126 = vshrl.u32 %v125, 7
    %v127 = vsub.s32 2, %v126
    %v128 = vrot.slane %v26, %v127
    %v129 = vsub.f32 %v128, %v124
    %v130 = vmul.f32 %v102, %v123
    %v131 = vadd.f32 %v130, %v129
    %v132 = vmax.f32 %v131, 0.0
    %v133 = vld [vmem:[%s3] sm:$0xff]
    %v134 = vld [vmem:[%s3 + $0x8] sm:$0xff]
    %v135 = vld [vmem:[%s3 + $0x10] sm:$0xff]
    %v136 = vld [vmem:[%s3 + $0x18] sm:$0xff]
    %v137 = vld [vmem:[%s3 + $0x20] sm:$0xff]
    %v138 = vld [vmem:[%s3 + $0x28] sm:$0xff]
    %v139 = vld [vmem:[%s3 + $0x30] sm:$0xff]
    %v140 = vld [vmem:[%s3 + $0x38] sm:$0xff]
    %v141 = vld [vmem:[%s3 + $0x40] sm:$0xff]
    %v142 = vld [vmem:[%s3 + $0x48] sm:$0xff]
    %v143 = vld [vmem:[%s3 + $0x50] sm:$0xff]
    %v144 = vld [vmem:[%s3 + $0x58] sm:$0xff]
    %v145 = vld [vmem:[%s3 + $0x60] sm:$0xff]
    %v146 = vld [vmem:[%s3 + $0x68] sm:$0xff]
    %v147 = vld [vmem:[%s3 + $0x70] sm:$0xff]
    %v148 = vld [vmem:[%s3 + $0x78] sm:$0xff]
    %v149 = vld [vmem:[%s4] sm:$0x1]
    %v151 = vlaneseq
    %v152 = vshrl.u32 %v151, 7
    %v153 = vsub.s32 0, %v152
    %v154 = vrot.slane %v149, %v153
    %156 = vmatprep.subr.mxu0 0.0
    %157 = vmatpush1.msra.mxu0 %v133
    %158 = vmatprep.subr.mxu0 0.0
    %159 = vmatpush1.msra.mxu0 %v134
    %160 = vmatprep.subr.mxu0 0.0
    %161 = vmatpush1.msra.mxu0 %v135
    %162 = vmatprep.subr.mxu0 0.0
    %163 = vmatpush1.msra.mxu0 %v136
    %164 = vmatprep.subr.mxu0 0.0
    %165 = vmatpush1.msra.mxu0 %v137
    %166 = vmatprep.subr.mxu0 0.0
    %167 = vmatpush1.msra.mxu0 %v138
    %168 = vmatprep.subr.mxu0 0.0
    %169 = vmatpush1.msra.mxu0 %v139
    %170 = vmatprep.subr.mxu0 0.0
    %171 = vmatpush1.msra.mxu0 %v140
    %172 = vmatprep.subr.mxu0 0.0
    %173 = vmatpush1.msra.mxu0 %v141
    %174 = vmatprep.subr.mxu0 0.0
    %175 = vmatpush1.msra.mxu0 %v142
    %176 = vmatprep.subr.mxu0 0.0
    %177 = vmatpush1.msra.mxu0 %v143
    %178 = vmatprep.subr.mxu0 0.0
    %179 = vmatpush1.msra.mxu0 %v144
    %180 = vmatprep.subr.mxu0 0.0
    %181 = vmatpush1.msra.mxu0 %v145
    %182 = vmatprep.subr.mxu0 0.0
    %183 = vmatpush1.msra.mxu0 %v146
    %184 = vmatprep.subr.mxu0 0.0
    %185 = vmatpush1.msra.mxu0 %v147
    %186 = vmatprep.subr.mxu0 0.0
    %187 = vmatpush1.msra.mxu0 %v148
    %188 = vmatprep.subr.mxu0 0.0
    %189 = vmatpush1.msra.mxu0 0.0
    %190 = vmatprep.subr.mxu0 0.0
    %191 = vmatpush1.msra.mxu0 0.0
    %192 = vmatprep.subr.mxu0 0.0
    %193 = vmatpush1.msra.mxu0 0.0
    %194 = vmatprep.subr.mxu0 0.0
    %195 = vmatpush1.msra.mxu0 0.0
    %196 = vmatprep.subr.mxu0 0.0
    %197 = vmatpush1.msra.mxu0 0.0
    %198 = vmatprep.subr.mxu0 0.0
    %199 = vmatpush1.msra.mxu0 0.0
    %200 = vmatprep.subr.mxu0 0.0
    %201 = vmatpush1.msra.mxu0 0.0
    %202 = vmatprep.subr.mxu0 0.0
    %203 = vmatpush1.msra.mxu0 0.0
    %204 = vmatprep.subr.mxu0 0.0
    %205 = vmatpush1.msra.mxu0 0.0
    %206 = vmatprep.subr.mxu0 0.0
    %207 = vmatpush1.msra.mxu0 0.0
    %208 = vmatprep.subr.mxu0 0.0
    %209 = vmatpush1.msra.mxu0 0.0
    %210 = vmatprep.subr.mxu0 0.0
    %211 = vmatpush1.msra.mxu0 0.0
    %212 = vmatprep.subr.mxu0 0.0
    %213 = vmatpush1.msra.mxu0 0.0
    %214 = vmatprep.subr.mxu0 0.0
    %215 = vmatpush1.msra.mxu0 0.0
    %216 = vmatprep.subr.mxu0 0.0
    %217 = vmatpush1.msra.mxu0 0.0
    %218 = vmatprep.subr.mxu0 0.0
    %219 = vmatpush1.msra.mxu0 0.0
    %220 = vmatprep.mubr.f32.mxu0 0.0
    %221 = vmatmul.mubr.f32.gmra.mrb[0].mxu0 %v132
    %v222 = vpop.f32.mrb[0].mxu0
    %v223 = vadd.f32 %v154, %v222
    %v224 = vpop.f32.mrb[0].mxu0
    %225 = vdwg.mxu0
    %226 = vst.msk [vmem:[#allocation2] sm:$0xff] %vm31, %v223
    // Predicated region
    $region22: #{marginal_forward.1} parent=1 // pred_check
      _
    $region23: #{marginal_forward.1} parent=1 // pred_check_branch
      %228 = sbr.rel (0) target = $region25
    $region24: #{marginal_forward.1} parent=1 // pred_region
      %s230 = ssub.s32 128, 128
      %231 = vsyncadd [#allocation3], %s230
      %s233 = sshll.u32 [#allocation2], 4
      %s234 = int_to_ptr.vmem [resolvable:$true] %s233
      %236 = dma.vmem_to_hbm [thread:$0]  %s234, 128, %s5, [#allocation3]
    $region25: #{marginal_forward.1} parent=1 // pred_fallthru
      _
    // Predicated region
    $region26: #{marginal_forward.1} parent=1 // pred_check
      _
    $region27: #{marginal_forward.1} parent=1 // pred_check_branch
      %238 = sbr.rel (0) target = $region29
    $region28: #{marginal_forward.1} parent=1 // pred_region
      %239 = dma.done [#allocation3], 128
    $region29: #{marginal_forward.1} parent=1 // pred_fallthru
      _
    %240 = vsyncpa [#allocation3], 1

</llo_original>
